<compile_context>
chip_gen: v7x
topology: tpu7x:2x2x1
jax: 0.10.0
libtpu: 0.0.40
codegen_flags: <defaults>
</compile_context>

<pallas_src>
import jax
import jax.numpy as jnp
from jax.experimental import pallas as pl
from jax.experimental.pallas import tpu as pltpu


def _round_up(x: int, m: int) -> int:
    return ((x + m - 1) // m) * m


def _mlp_kernel(x_ref, w1_ref, b1_ref, w2_ref, b2_ref, o_ref):
    # fc1: cast x to the weight dtype so bf16 weights use the native bf16 MXU
    # path on v6e/v7x (no-op for f32).  Accumulate in f32.
    x = x_ref[...].astype(w1_ref.dtype)
    h = jnp.dot(x, w1_ref[...], preferred_element_type=jnp.float32)
    h = jnp.maximum(h + b1_ref[...].astype(jnp.float32), 0.0)  # f32 VPU math
    # fc2 (+ bias): cast the activation right before the second matmul.
    out = jnp.dot(h.astype(w2_ref.dtype), w2_ref[...],
                  preferred_element_type=jnp.float32)
    o_ref[...] = (out + b2_ref[...].astype(jnp.float32)).astype(o_ref.dtype)


def _choose_tm(m: int, tm_max: int, min_steps: int) -> int:
    """Pick the row tile.

    Big tiles amortize the ~0.35 us/step pipeline overhead and make each DMA
    large enough to approach HBM roofline; but keep >= min_steps grid steps on
    large problems so both v7x TensorCores get work and the software pipeline
    has body iterations.  Tiles are multiples of 256 (MXU rows on v6e/v7x,
    also a multiple of 8/128) except when the whole problem fits one block.
    """
    m8 = _round_up(max(m, 1), 8)
    if m8 <= 1024:
        # Small problem: single (possibly ragged) block; tiling harder only
        # adds fixed per-step overhead.
        return min(m8, tm_max)
    tm = _round_up(pl.cdiv(m, min_steps), 256)
    return max(256, min(tm, tm_max))


def sequence_agent_forward(x, w1, b1, w2, b2, *, tm_max: int = 4096,
                           min_steps: int = 4):
    """x: (..., input_dim)  ->  (..., output_dim).

    Weights are (in_features, out_features) == PyTorch W^T.
    """
    orig_shape = x.shape
    input_dim = w1.shape[0]
    hidden_dim = w1.shape[1]
    output_dim = w2.shape[1]
    assert orig_shape[-1] == input_dim

    # Flatten leading dims; no row padding, no output-lane padding.
    m = 1
    for d in orig_shape[:-1]:
        m *= d
    x2d = x.reshape(m, input_dim)

    tm = _choose_tm(m, tm_max, min_steps)
    grid = (pl.cdiv(m, tm),)   # ragged last block handled by Pallas

    # ---- cost / VMEM hints (real shapes, no padding) ----------------------
    xb = jnp.dtype(x.dtype).itemsize
    wb = jnp.dtype(w1.dtype).itemsize
    flops = 2 * m * (input_dim * hidden_dim + hidden_dim * output_dim)
    bytes_accessed = (
        m * input_dim * xb                                   # x
        + (input_dim * hidden_dim + hidden_dim) * wb         # w1, b1
        + (hidden_dim * output_dim + output_dim) * wb        # w2, b2
        + m * output_dim * xb                                # out
    )
    per_step_bytes = (
        2 * tm * input_dim * xb                              # x (2 buffers)
        + 2 * tm * output_dim * xb                           # out (2 buffers)
        + 4 * tm * (hidden_dim + output_dim)                 # f32 intermediates
        + 2 * (input_dim * hidden_dim + hidden_dim * output_dim
               + hidden_dim + output_dim) * wb               # resident weights
    )
    # Honest scoped-VMEM request: 2x working set + headroom, clamped to the
    # v7x physical budget (64 MiB/TC); small floor for compiler scratch.
    vmem_limit = int(min(64 << 20, max(2 * per_step_bytes + (4 << 20),
                                       8 << 20)))

    out2d = pl.pallas_call(
        _mlp_kernel,
        out_shape=jax.ShapeDtypeStruct((m, output_dim), x.dtype),
        grid=grid,
        in_specs=[
            pl.BlockSpec((tm, input_dim), lambda i: (i, 0)),          # x tile
            pl.BlockSpec((input_dim, hidden_dim), lambda i: (0, 0)),  # w1 (resident)
            pl.BlockSpec((1, hidden_dim), lambda i: (0, 0)),          # b1 (resident)
            pl.BlockSpec((hidden_dim, output_dim), lambda i: (0, 0)), # w2 (resident)
            pl.BlockSpec((1, output_dim), lambda i: (0, 0)),          # b2 (resident)
        ],
        out_specs=pl.BlockSpec((tm, output_dim), lambda i: (i, 0)),
        compiler_params=pltpu.CompilerParams(
            dimension_semantics=("parallel",),   # megacore-shard M on v7x
            vmem_limit_bytes=vmem_limit,
        ),
        cost_estimate=pl.CostEstimate(
            flops=flops, transcendentals=0, bytes_accessed=bytes_accessed),
    )(x2d, w1, b1.reshape(1, hidden_dim), w2, b2.reshape(1, output_dim))

    return out2d.reshape(*orig_shape[:-1], output_dim)


def init_params(key, input_dim, hidden_dim, output_dim, dtype=jnp.float32):
    """Deterministic init mimicking nn.Linear (uniform +-1/sqrt(fan_in)).

    Weights returned as (in_features, out_features), i.e. PyTorch W^T.
    """
    k1, k2, k3, k4 = jax.random.split(key, 4)
    bound1 = 1.0 / jnp.sqrt(jnp.float32(input_dim))
    bound2 = 1.0 / jnp.sqrt(jnp.float32(hidden_dim))
    w1 = jax.random.uniform(k1, (input_dim, hidden_dim), dtype,
                            minval=-bound1, maxval=bound1)
    b1 = jax.random.uniform(k2, (hidden_dim,), dtype,
                            minval=-bound1, maxval=bound1)
    w2 = jax.random.uniform(k3, (hidden_dim, output_dim), dtype,
                            minval=-bound2, maxval=bound2)
    b2 = jax.random.uniform(k4, (output_dim,), dtype,
                            minval=-bound2, maxval=bound2)
    return w1, b1, w2, b2


if __name__ == "__main__":
    # Small shapes consistent with a sequence-of-observations agent:
    # batch=2, seq=8, input_dim=32, hidden_dim=32, output_dim=16.
    batch, seq, input_dim, hidden_dim, output_dim = 2, 8, 32, 32, 16

    key = jax.random.PRNGKey(0)
    kx, kp = jax.random.split(key)
    x = jax.random.normal(kx, (batch, seq, input_dim), dtype=jnp.float32)
    w1, b1, w2, b2 = init_params(kp, input_dim, hidden_dim, output_dim)

    out = sequence_agent_forward(x, w1, b1, w2, b2)
    out = jax.block_until_ready(out)

    # Pure-JAX reference (same math as the PyTorch module).
    ref = jnp.maximum(x @ w1 + b1, 0.0) @ w2 + b2
    assert out.shape == (batch, seq, output_dim)
    assert jnp.allclose(out, ref, atol=1e-5, rtol=1e-5)

    # Exercise the tiled path: M = 64*33 = 2112 rows -> multi-step grid with a
    # ragged (masked-store) final block, no wrapper-side padding or slicing.
    xl = jax.random.normal(kx, (64, 33, input_dim), dtype=jnp.float32)
    outl = jax.block_until_ready(sequence_agent_forward(xl, w1, b1, w2, b2))
    refl = jnp.maximum(xl @ w1 + b1, 0.0) @ w2 + b2
    assert outl.shape == (64, 33, output_dim)
    assert jnp.allclose(outl, refl, atol=1e-5, rtol=1e-5)

    print("KERNEL_OK")
</pallas_src>

<mosaic_0001>
module attributes {stable_mosaic.version = 11 : i64} {
  func.func @_mlp_kernel(%arg0: i32, %arg1: memref<16x32xf32, #tpu.memory_space<vmem>>, %arg2: memref<32x32xf32, #tpu.memory_space<vmem>>, %arg3: memref<1x32xf32, #tpu.memory_space<vmem>>, %arg4: memref<32x16xf32, #tpu.memory_space<vmem>>, %arg5: memref<1x16xf32, #tpu.memory_space<vmem>>, %arg6: memref<16x16xf32, #tpu.memory_space<vmem>>) attributes {dimension_semantics = [#tpu.dimension_semantics<parallel>], iteration_bounds = array<i64: 1>, scalar_prefetch = 0 : i64, scratch_operands = 0 : i64, tpu.core_type = #tpu.core_type<tc>, window_params = [{transform_indices = @transform_0, window_bounds = array<i64: 16, 32>}, {pipeline_mode = #tpu.pipeline_mode<synchronous>, transform_indices = @transform_1, window_bounds = array<i64: 32, 32>}, {pipeline_mode = #tpu.pipeline_mode<synchronous>, transform_indices = @transform_2, window_bounds = array<i64: 1, 32>}, {pipeline_mode = #tpu.pipeline_mode<synchronous>, transform_indices = @transform_3, window_bounds = array<i64: 32, 16>}, {pipeline_mode = #tpu.pipeline_mode<synchronous>, transform_indices = @transform_4, window_bounds = array<i64: 1, 16>}, {transform_indices = @transform_5, window_bounds = array<i64: 16, 16>}]} {
    %c0 = arith.constant 0 : index
    %c0_0 = arith.constant 0 : index
    %0 = vector.load %arg1[%c0, %c0_0] : memref<16x32xf32, #tpu.memory_space<vmem>>, vector<16x32xf32>
    %c0_1 = arith.constant 0 : index
    %c0_2 = arith.constant 0 : index
    %1 = vector.load %arg2[%c0_1, %c0_2] : memref<32x32xf32, #tpu.memory_space<vmem>>, vector<32x32xf32>
    %cst = arith.constant dense<0.000000e+00> : vector<16x32xf32>
    %2 = tpu.matmul %0, %1, %cst {dimension_numbers = #tpu.dot_dimension_numbers<[1], [0], [0], [1], [0, 0, 1, 1], [], []>} : vector<16x32xf32>, vector<32x32xf32>, vector<16x32xf32> -> vector<16x32xf32>
    %c0_3 = arith.constant 0 : index
    %c0_4 = arith.constant 0 : index
    %3 = vector.load %arg3[%c0_3, %c0_4] : memref<1x32xf32, #tpu.memory_space<vmem>>, vector<1x32xf32>
    %4 = vector.broadcast %3 : vector<1x32xf32> to vector<16x32xf32>
    %5 = arith.addf %2, %4 : vector<16x32xf32>
    %cst_5 = arith.constant 0.000000e+00 : f32
    %6 = vector.broadcast %cst_5 : f32 to vector<16x32xf32>
    %7 = arith.maximumf %5, %6 : vector<16x32xf32>
    %c0_6 = arith.constant 0 : index
    %c0_7 = arith.constant 0 : index
    %8 = vector.load %arg4[%c0_6, %c0_7] : memref<32x16xf32, #tpu.memory_space<vmem>>, vector<32x16xf32>
    %cst_8 = arith.constant dense<0.000000e+00> : vector<16x16xf32>
    %9 = tpu.matmul %7, %8, %cst_8 {dimension_numbers = #tpu.dot_dimension_numbers<[1], [0], [0], [1], [0, 0, 1, 1], [], []>} : vector<16x32xf32>, vector<32x16xf32>, vector<16x16xf32> -> vector<16x16xf32>
    %c0_9 = arith.constant 0 : index
    %c0_10 = arith.constant 0 : index
    %10 = vector.load %arg5[%c0_9, %c0_10] : memref<1x16xf32, #tpu.memory_space<vmem>>, vector<1x16xf32>
    %11 = vector.broadcast %10 : vector<1x16xf32> to vector<16x16xf32>
    %12 = arith.addf %9, %11 : vector<16x16xf32>
    %c0_11 = arith.constant 0 : index
    %c0_12 = arith.constant 0 : index
    %13 = vector.load %arg6[%c0_11, %c0_12] : memref<16x16xf32, #tpu.memory_space<vmem>>, vector<16x16xf32>
    tpu.vector_store %arg6[%c0_11, %c0_12], %12 {strides = array<i32>} : memref<16x16xf32, #tpu.memory_space<vmem>>, vector<16x16xf32>,
    return
  }
  func.func @transform_0(%arg0: i32) -> (i32, i32) {
    %c0_i32 = arith.constant 0 : i32
    %c0_i32_0 = arith.constant 0 : i32
    return %arg0, %c0_i32 : i32, i32
  }
  func.func @transform_1(%arg0: i32) -> (i32, i32) {
    %c0_i32 = arith.constant 0 : i32
    %c0_i32_0 = arith.constant 0 : i32
    %c0_i32_1 = arith.constant 0 : i32
    return %c0_i32, %c0_i32_0 : i32, i32
  }
  func.func @transform_2(%arg0: i32) -> (i32, i32) {
    %c0_i32 = arith.constant 0 : i32
    %c0_i32_0 = arith.constant 0 : i32
    %c0_i32_1 = arith.constant 0 : i32
    return %c0_i32, %c0_i32_0 : i32, i32
  }
  func.func @transform_3(%arg0: i32) -> (i32, i32) {
    %c0_i32 = arith.constant 0 : i32
    %c0_i32_0 = arith.constant 0 : i32
    %c0_i32_1 = arith.constant 0 : i32
    return %c0_i32, %c0_i32_0 : i32, i32
  }
  func.func @transform_4(%arg0: i32) -> (i32, i32) {
    %c0_i32 = arith.constant 0 : i32
    %c0_i32_0 = arith.constant 0 : i32
    %c0_i32_1 = arith.constant 0 : i32
    return %c0_i32, %c0_i32_0 : i32, i32
  }
  func.func @transform_5(%arg0: i32) -> (i32, i32) {
    %c0_i32 = arith.constant 0 : i32
    %c0_i32_0 = arith.constant 0 : i32
    return %arg0, %c0_i32 : i32, i32
  }
}

</mosaic_0001>

<llo_original>
// kernel: tpu_custom_call.1
$region0: #{tpu_custom_call.1}
  #allocation0 [shape = 'u32[]', space=smem, size = 0x4, offset = 0x4, fixed_abs, tag = 'smem constant byte address 0x4 - core index']
  #allocation1 [shape = 'u32[144,128]{1,0:T(1,128)}', space=vmem, size = 0x12000, scoped, tag = 'internal scratch']
  %s0 = inlined_call_operand.vmem [shape: f32[16,32], index: 0, kind: input, shape index: {}]
  %s1 = inlined_call_operand.vmem [shape: f32[32,32], index: 1, kind: input, shape index: {}]
  %s2 = inlined_call_operand.vmem [shape: f32[1,32], index: 2, kind: input, shape index: {}]
  %s3 = inlined_call_operand.vmem [shape: f32[32,16], index: 3, kind: input, shape index: {}]
  %s4 = inlined_call_operand.vmem [shape: f32[1,16], index: 4, kind: input, shape index: {}]
  %s5 = inlined_call_operand.hbm [shape: f32[16,16], index: 5, kind: output, shape index: {}]
  %s6 = sld [smem:[#allocation0]]
  $region30: #{tpu_custom_call.1} parent=0
    _
  %s8 = ssub.s32 1, %s6
  %s9 = scalar_select 0, %s8, %s6
  $region1: #{tpu_custom_call.1} parent=0
    #allocation2 [shape = 'u8[8192]{0}', space=vmem, size = 0x2000, scoped, tag = 'output window, operand 0, single buffered']
    #allocation3 [shape = 's32[1]{0}', space=sflag, size = 0x4, scoped, tag = 'scoped memory for tpu_custom_call.1']
    %10 = vsyncpa [#allocation3], 0
    // Predicated region
    $region2: #{tpu_custom_call.1} parent=1 // pred_check
      _
    $region3: #{tpu_custom_call.1} parent=1 // pred_check_branch
      %12 = sbr.rel (0) target = $region5
    $region4: #{tpu_custom_call.1} parent=1 // pred_region
      _
    $region5: #{tpu_custom_call.1} parent=1 // pred_fallthru
      _
    // Predicated region
    $region6: #{tpu_custom_call.1} parent=1 // pred_check
      _
    $region7: #{tpu_custom_call.1} parent=1 // pred_check_branch
      %14 = sbr.rel (0) target = $region9
    $region8: #{tpu_custom_call.1} parent=1 // pred_region
      _
    $region9: #{tpu_custom_call.1} parent=1 // pred_fallthru
      _
    // Predicated region
    $region10: #{tpu_custom_call.1} parent=1 // pred_check
      _
    $region11: #{tpu_custom_call.1} parent=1 // pred_check_branch
      %16 = sbr.rel (0) target = $region13
    $region12: #{tpu_custom_call.1} parent=1 // pred_region
      _
    $region13: #{tpu_custom_call.1} parent=1 // pred_fallthru
      _
    // Predicated region
    $region14: #{tpu_custom_call.1} parent=1 // pred_check
      _
    $region15: #{tpu_custom_call.1} parent=1 // pred_check_branch
      %18 = sbr.rel (0) target = $region17
    $region16: #{tpu_custom_call.1} parent=1 // pred_region
      _
    $region17: #{tpu_custom_call.1} parent=1 // pred_fallthru
      _
    // Predicated region
    $region18: #{tpu_custom_call.1} parent=1 // pred_check
      _
    $region19: #{tpu_custom_call.1} parent=1 // pred_check_branch
      %20 = sbr.rel (0) target = $region21
    $region20: #{tpu_custom_call.1} parent=1 // pred_region
      _
    $region21: #{tpu_custom_call.1} parent=1 // pred_fallthru
      _
    %v21 = vld [vmem:[%s0] sm:$0xff]
    %v22 = vld [vmem:[%s0 + $0x8] sm:$0xff]
    %v23 = vld [vmem:[%s1] sm:$0xff]
    %v24 = vld [vmem:[%s1 + $0x8] sm:$0xff]
    %v25 = vld [vmem:[%s1 + $0x10] sm:$0xff]
    %v26 = vld [vmem:[%s1 + $0x18] sm:$0xff]
    %v27 = vld [vmem:[%s2] sm:$0x1]
    %v29 = vlaneseq
    %v30 = vshrl.u32 %v29, 7
    %v31 = vsub.s32 0, %v30
    %v32 = vrot.slane %v27, %v31
    %vm34 = vcmask 261120
    %v36 = vsel %vm34, %v21, 0
    %v39 = vsel %vm34, %v22, 0
    %41 = vmatprep.subr.mxu0 0.0
    %42 = vmatpush1.msra.mxu0 %v23
    %43 = vmatprep.subr.mxu0 0.0
    %44 = vmatpush1.msra.mxu0 %v24
    %45 = vmatprep.subr.mxu0 0.0
    %46 = vmatpush1.msra.mxu0 %v25
    %47 = vmatprep.subr.mxu0 0.0
    %48 = vmatpush1.msra.mxu0 %v26
    %49 = vmatprep.subr.mxu0 0.0
    %50 = vmatpush1.msra.mxu0 0.0
    %51 = vmatprep.subr.mxu0 0.0
    %52 = vmatpush1.msra.mxu0 0.0
    %53 = vmatprep.subr.mxu0 0.0
    %54 = vmatpush1.msra.mxu0 0.0
    %55 = vmatprep.subr.mxu0 0.0
    %56 = vmatpush1.msra.mxu0 0.0
    %57 = vmatprep.subr.mxu0 0.0
    %58 = vmatpush1.msra.mxu0 0.0
    %59 = vmatprep.subr.mxu0 0.0
    %60 = vmatpush1.msra.mxu0 0.0
    %61 = vmatprep.subr.mxu0 0.0
    %62 = vmatpush1.msra.mxu0 0.0
    %63 = vmatprep.subr.mxu0 0.0
    %64 = vmatpush1.msra.mxu0 0.0
    %65 = vmatprep.subr.mxu0 0.0
    %66 = vmatpush1.msra.mxu0 0.0
    %67 = vmatprep.subr.mxu0 0.0
    %68 = vmatpush1.msra.mxu0 0.0
    %69 = vmatprep.subr.mxu0 0.0
    %70 = vmatpush1.msra.mxu0 0.0
    %71 = vmatprep.subr.mxu0 0.0
    %72 = vmatpush1.msra.mxu0 0.0
    %73 = vmatprep.subr.mxu0 0.0
    %74 = vmatpush1.msra.mxu0 0.0
    %75 = vmatprep.subr.mxu0 0.0
    %76 = vmatpush1.msra.mxu0 0.0
    %77 = vmatprep.subr.mxu0 0.0
    %78 = vmatpush1.msra.mxu0 0.0
    %79 = vmatprep.subr.mxu0 0.0
    %80 = vmatpush1.msra.mxu0 0.0
    %81 = vmatprep.subr.mxu0 0.0
    %82 = vmatpush1.msra.mxu0 0.0
    %83 = vmatprep.subr.mxu0 0.0
    %84 = vmatpush1.msra.mxu0 0.0
    %85 = vmatprep.subr.mxu0 0.0
    %86 = vmatpush1.msra.mxu0 0.0
    %87 = vmatprep.subr.mxu0 0.0
    %88 = vmatpush1.msra.mxu0 0.0
    %89 = vmatprep.subr.mxu0 0.0
    %90 = vmatpush1.msra.mxu0 0.0
    %91 = vmatprep.subr.mxu0 0.0
    %92 = vmatpush1.msra.mxu0 0.0
    %93 = vmatprep.subr.mxu0 0.0
    %94 = vmatpush1.msra.mxu0 0.0
    %95 = vmatprep.subr.mxu0 0.0
    %96 = vmatpush1.msra.mxu0 0.0
    %97 = vmatprep.subr.mxu0 0.0
    %98 = vmatpush1.msra.mxu0 0.0
    %99 = vmatprep.subr.mxu0 0.0
    %100 = vmatpush1.msra.mxu0 0.0
    %101 = vmatprep.subr.mxu0 0.0
    %102 = vmatpush1.msra.mxu0 0.0
    %103 = vmatprep.subr.mxu0 0.0
    %104 = vmatpush1.msra.mxu0 0.0
    %105 = vmatprep.mubr.f32.mxu0 0.0
    %106 = vmatmul.mubr.f32.gmra.mrb[0].mxu0 %v36
    %v107 = vpop.f32.mrb[0].mxu0
    %v108 = vadd.f32 %v32, %v107
    %v109 = vpop.f32.mrb[0].mxu0
    %110 = vmatprep.mubr.f32.mxu0 0.0
    %111 = vmatmul.mubr.f32.gmra.mrb[0].mxu0 %v39
    %v112 = vpop.f32.mrb[0].mxu0
    %v113 = vadd.f32 %v32, %v112
    %v114 = vpop.f32.mrb[0].mxu0
    %115 = vdwg.mxu0
    %v116 = vmax.f32 %v108, 0.0
    %v117 = vmax.f32 %v113, 0.0
    %v118 = vld [vmem:[%s3] sm:$0xff]
    %v119 = vld [vmem:[%s3 + $0x8] sm:$0xff]
    %v120 = vld [vmem:[%s3 + $0x10] sm:$0xff]
    %v121 = vld [vmem:[%s3 + $0x18] sm:$0xff]
    %v122 = vld [vmem:[%s4] sm:$0x1]
    %v124 = vlaneseq
    %v125 = vshrl.u32 %v124, 7
    %v126 = vsub.s32 0, %v125
    %v127 = vrot.slane %v122, %v126
    %v130 = vsel %vm34, %v116, 0
    %v133 = vsel %vm34, %v117, 0
    %135 = vmatprep.subr.mxu0 0.0
    %136 = vmatpush1.msra.mxu0 %v118
    %137 = vmatprep.subr.mxu0 0.0
    %138 = vmatpush1.msra.mxu0 %v119
    %139 = vmatprep.subr.mxu0 0.0
    %140 = vmatpush1.msra.mxu0 %v120
    %141 = vmatprep.subr.mxu0 0.0
    %142 = vmatpush1.msra.mxu0 %v121
    %143 = vmatprep.subr.mxu0 0.0
    %144 = vmatpush1.msra.mxu0 0.0
    %145 = vmatprep.subr.mxu0 0.0
    %146 = vmatpush1.msra.mxu0 0.0
    %147 = vmatprep.subr.mxu0 0.0
    %148 = vmatpush1.msra.mxu0 0.0
    %149 = vmatprep.subr.mxu0 0.0
    %150 = vmatpush1.msra.mxu0 0.0
    %151 = vmatprep.subr.mxu0 0.0
    %152 = vmatpush1.msra.mxu0 0.0
    %153 = vmatprep.subr.mxu0 0.0
    %154 = vmatpush1.msra.mxu0 0.0
    %155 = vmatprep.subr.mxu0 0.0
    %156 = vmatpush1.msra.mxu0 0.0
    %157 = vmatprep.subr.mxu0 0.0
    %158 = vmatpush1.msra.mxu0 0.0
    %159 = vmatprep.subr.mxu0 0.0
    %160 = vmatpush1.msra.mxu0 0.0
    %161 = vmatprep.subr.mxu0 0.0
    %162 = vmatpush1.msra.mxu0 0.0
    %163 = vmatprep.subr.mxu0 0.0
    %164 = vmatpush1.msra.mxu0 0.0
    %165 = vmatprep.subr.mxu0 0.0
    %166 = vmatpush1.msra.mxu0 0.0
    %167 = vmatprep.subr.mxu0 0.0
    %168 = vmatpush1.msra.mxu0 0.0
    %169 = vmatprep.subr.mxu0 0.0
    %170 = vmatpush1.msra.mxu0 0.0
    %171 = vmatprep.subr.mxu0 0.0
    %172 = vmatpush1.msra.mxu0 0.0
    %173 = vmatprep.subr.mxu0 0.0
    %174 = vmatpush1.msra.mxu0 0.0
    %175 = vmatprep.subr.mxu0 0.0
    %176 = vmatpush1.msra.mxu0 0.0
    %177 = vmatprep.subr.mxu0 0.0
    %178 = vmatpush1.msra.mxu0 0.0
    %179 = vmatprep.subr.mxu0 0.0
    %180 = vmatpush1.msra.mxu0 0.0
    %181 = vmatprep.subr.mxu0 0.0
    %182 = vmatpush1.msra.mxu0 0.0
    %183 = vmatprep.subr.mxu0 0.0
    %184 = vmatpush1.msra.mxu0 0.0
    %185 = vmatprep.subr.mxu0 0.0
    %186 = vmatpush1.msra.mxu0 0.0
    %187 = vmatprep.subr.mxu0 0.0
    %188 = vmatpush1.msra.mxu0 0.0
    %189 = vmatprep.subr.mxu0 0.0
    %190 = vmatpush1.msra.mxu0 0.0
    %191 = vmatprep.subr.mxu0 0.0
    %192 = vmatpush1.msra.mxu0 0.0
    %193 = vmatprep.subr.mxu0 0.0
    %194 = vmatpush1.msra.mxu0 0.0
    %195 = vmatprep.subr.mxu0 0.0
    %196 = vmatpush1.msra.mxu0 0.0
    %197 = vmatprep.subr.mxu0 0.0
    %198 = vmatpush1.msra.mxu0 0.0
    %199 = vmatprep.mubr.f32.mxu0 0.0
    %200 = vmatmul.mubr.f32.gmra.mrb[0].mxu0 %v130
    %v201 = vpop.f32.mrb[0].mxu0
    %v202 = vadd.f32 %v127, %v201
    %v203 = vpop.f32.mrb[0].mxu0
    %204 = vmatprep.mubr.f32.mxu0 0.0
    %205 = vmatmul.mubr.f32.gmra.mrb[0].mxu0 %v133
    %v206 = vpop.f32.mrb[0].mxu0
    %v207 = vadd.f32 %v127, %v206
    %v208 = vpop.f32.mrb[0].mxu0
    %209 = vdwg.mxu0
    %vm210 = vcmask 130048
    %211 = vst.msk [vmem:[#allocation2] sm:$0xff] %vm210, %v202
    %212 = vst.msk [vmem:[#allocation2 + $0x8] sm:$0xff] %vm210, %v207
    // Predicated region
    $region22: #{tpu_custom_call.1} parent=1 // pred_check
      _
    $region23: #{tpu_custom_call.1} parent=1 // pred_check_branch
      %214 = sbr.rel (0) target = $region25
    $region24: #{tpu_custom_call.1} parent=1 // pred_region
      %s216 = ssub.s32 256, 256
      %217 = vsyncadd [#allocation3], %s216
      %s218 = sshll.u32 [#allocation2], 4
      %s219 = int_to_ptr.vmem [resolvable:$true] %s218
      %224 = dma.vmem_to_hbm [thread:$0]  %s219, 256, %s5, [#allocation3], 128, 128, 8
    $region25: #{tpu_custom_call.1} parent=1 // pred_fallthru
      _
    // Predicated region
    $region26: #{tpu_custom_call.1} parent=1 // pred_check
      _
    $region27: #{tpu_custom_call.1} parent=1 // pred_check_branch
      %226 = sbr.rel (0) target = $region29
    $region28: #{tpu_custom_call.1} parent=1 // pred_region
      %227 = dma.done [#allocation3], 256
    $region29: #{tpu_custom_call.1} parent=1 // pred_fallthru
      _
    %228 = vsyncpa [#allocation3], 1

</llo_original>
